<compile_context>
chip_gen: v5e
topology: v5e:2x2
jax: 0.10.0
libtpu: 0.0.40
codegen_flags: <defaults>
</compile_context>

<pallas_src>
import functools

import jax
import jax.numpy as jnp
from jax import lax
from jax.experimental import pallas as pl
from jax.experimental.pallas import tpu as pltpu

EPS = 1e-8          # matches module-level EPS
NORM_EPS = 1e-12    # torch.nn.functional.normalize default eps


def _round_up(x: int, m: int) -> int:
    return ((x + m - 1) // m) * m


def _l2_normalize_f32(v):
    vf = v.astype(jnp.float32)
    n = jnp.sqrt(jnp.sum(vf * vf, axis=-1, keepdims=True))
    return vf / jnp.maximum(n, NORM_EPS)


def _loss_contrastive_kernel(x_ref, lab_ref, proto_ref, cnt_ref, out_ref, *,
                             alpha: float, beta: float, inv_temp: float,
                             tb: int, b_valid: int, l_valid: int):
    f32 = jnp.float32
    i = pl.program_id(0)
    row0 = pl.multiple_of(i * tb, tb)

    # Inputs are already L2-normalized / cast in the wrapper (hoisted out of the
    # grid loop) -- the kernel does no per-step normalization.
    xn_all = x_ref[...]                      # (Bp, Fp)  mxu dtype, normalized
    lab_all = lab_ref[...]                   # (Bp, Lp)  mxu dtype
    pn = proto_ref[...]                      # (Lp, Fp)  mxu dtype, normalized
    Bp = xn_all.shape[0]
    Lp = lab_all.shape[1]

    xn_rows = x_ref[pl.ds(row0, tb), :]      # (tb, Fp)  row tile (sliced, not re-normalized)
    lab_rows_m = lab_ref[pl.ds(row0, tb), :]  # (tb, Lp)  MXU operand
    lab_rows = lab_rows_m.astype(f32)        # (tb, Lp)  f32

    ct = (((1,), (1,)), ((), ()))            # contract last dims: A @ B.T

    # ---- similarities on the MXU (f32 accumulation) ----
    sim_qq = lax.dot_general(xn_rows, xn_all, ct, preferred_element_type=f32)  # (tb, Bp)
    sim_qp = lax.dot_general(xn_rows, pn, ct, preferred_element_type=f32)      # (tb, Lp)

    # ---- label statistics (binary labels: |a OR b| = |a| + |b| - |a AND b|) ----
    s_rows = jnp.maximum(jnp.sum(lab_rows, axis=1, keepdims=True), 1.0)  # (tb, 1)
    inv_s = pl.reciprocal(s_rows, approx=True)
    and_rb = lax.dot_general(lab_rows_m, lab_all, ct,
                             preferred_element_type=f32)                 # (tb, Bp)
    or_rb = jnp.maximum(s_rows + cnt_ref[...] - and_rb, 1.0)             # (tb, Bp)
    inv_or = pl.reciprocal(or_rb, approx=True)

    # M[a, c] = sum_b labels[b, c] / |a OR b|  (collapses the reference 3-D einsum)
    M = lax.dot_general(inv_or.astype(lab_all.dtype), lab_all,
                        (((1,), (0,)), ((), ())), preferred_element_type=f32)  # (tb, Lp)
    normalize = lab_rows * (alpha * M + 1.0 - alpha * inv_s)                   # (tb, Lp)
    Q = lab_rows * pl.reciprocal(normalize + EPS, approx=True)                 # (tb, Lp)

    # w_ff[a, b] = alpha / |a OR b| * sum_c Q[a, c] * labels[b, c]
    QL = lax.dot_general(Q.astype(lab_all.dtype), lab_all, ct,
                         preferred_element_type=f32)                           # (tb, Bp)

    # masks folded directly into the weight / exp sums (no f32 mask arrays)
    g_rows = row0 + lax.broadcasted_iota(jnp.int32, (tb, Bp), 0)
    cols_b = lax.broadcasted_iota(jnp.int32, (tb, Bp), 1)
    valid_qq = jnp.logical_and(g_rows != cols_b, cols_b < b_valid)
    cols_l = lax.broadcasted_iota(jnp.int32, (tb, Lp), 1)
    valid_qp = cols_l < l_valid

    w_ff = jnp.where(valid_qq, (alpha * QL) * inv_or, 0.0)    # (tb, Bp)
    w_fp = Q                                                  # (tb, Lp) zero on padded cols

    # ---- masked, temperature log-softmax over the [qq | qp] columns ----
    lg_qq = sim_qq * inv_temp
    lg_qp = sim_qp * inv_temp
    # NOTE: the row max includes padded (zero-similarity) columns; this is
    # numerically harmless because the shift cancels in logits - log(den).
    mx = jnp.maximum(jnp.max(lg_qq, axis=1, keepdims=True),
                     jnp.max(lg_qp, axis=1, keepdims=True))
    lg_qq = lg_qq - mx
    lg_qp = lg_qp - mx

    # numerator as sum(lg*w) - log_den*sum(w): masked positions have w == 0
    sum_w = (jnp.sum(w_ff, axis=1, keepdims=True)
             + jnp.sum(w_fp, axis=1, keepdims=True))                 # (tb, 1)
    num_lg = (jnp.sum(lg_qq * w_ff, axis=1, keepdims=True)
              + jnp.sum(lg_qp * w_fp, axis=1, keepdims=True))        # (tb, 1)

    den = (beta * jnp.sum(jnp.where(valid_qq, jnp.exp(lg_qq), 0.0),
                          axis=1, keepdims=True)
           + jnp.sum(jnp.where(valid_qp, jnp.exp(lg_qp), 0.0),
                     axis=1, keepdims=True))                         # (tb, 1)

    per_sample = jnp.log(den) * sum_w - num_lg                       # (tb, 1)  == -sum((lg-logden)*w)

    part = jnp.sum(per_sample * inv_s, axis=0, keepdims=True)        # (1, 1) partial of B*loss
    out_ref[...] = jnp.broadcast_to(part, out_ref.shape).astype(f32)


def loss_contrastive_msc(output_query, labels_query, prototype, *,
                         alpha: float, beta: float, temp: float = 0.07,
                         tile_b: int = 256, mxu_dtype=jnp.bfloat16):
    """Pallas equivalent of LossContrastiveMSC.forward -> scalar loss.

    tile_b: row tile (auto-shrinks so (tb, B)-sized f32 temporaries + resident
            inputs fit a conservative v7x per-TC VMEM budget; 256 is a good
            default on v5e/v6e).  mxu_dtype: matmul operand dtype (bf16 default;
            float32 reproduces the PyTorch forward to ~1e-3).
    """
    assert temp > 0
    B, F = output_query.shape
    L, F2 = prototype.shape
    assert F2 == F and labels_query.shape == (B, L)

    f32 = jnp.float32
    mxu_bytes = jnp.dtype(mxu_dtype).itemsize

    # lane-dense padding: zero feature/label columns preserve norms, dot products
    # and label statistics; padded batch rows are masked inside the kernel.
    Fp = _round_up(F, 128)
    Lp = _round_up(L, 128)
    Bp8 = _round_up(B, 8)
    tb = _round_up(min(int(tile_b), Bp8), 8)

    def _footprint(tb_):
        Bp_ = _round_up(Bp8, tb_)
        resident = (Bp_ * Fp + Bp_ * Lp + Lp * Fp) * mxu_bytes + Bp_ * 4
        temps = (8 * tb_ * Bp_ + 6 * tb_ * Lp) * 4      # live f32 intermediates
        return resident + temps

    # shrink the row tile so the live footprint fits a conservative v7x budget
    while tb > 128 and _footprint(tb) > (48 << 20):
        tb = _round_up(tb // 2, 8)
    Bp = _round_up(Bp8, tb)
    T = Bp // tb

    # explicit scoped-VMEM budget derived from the footprint (default scoped
    # limits: 16 MiB v5e / 32 MiB v6e,v7x); clamped to 64 MiB = v7x physical/TC.
    vmem_limit = int(min(max(_footprint(tb) + (4 << 20), 16 << 20), 64 << 20))

    # ---- one-shot prologue (hoisted out of the grid): normalize, cast, pad ----
    xn = _l2_normalize_f32(output_query)                 # (B, F) f32, F.normalize semantics
    pn = _l2_normalize_f32(prototype)                    # (L, F) f32
    x_p = jnp.zeros((Bp, Fp), mxu_dtype).at[:B, :F].set(xn.astype(mxu_dtype))
    lab_p = jnp.zeros((Bp, Lp), mxu_dtype).at[:B, :L].set(labels_query.astype(mxu_dtype))
    proto_p = jnp.zeros((Lp, Fp), mxu_dtype).at[:L, :F].set(pn.astype(mxu_dtype))
    counts = jnp.zeros((1, Bp), f32).at[0, :B].set(labels_query.astype(f32).sum(axis=1))

    kernel = functools.partial(
        _loss_contrastive_kernel,
        alpha=float(alpha), beta=float(beta), inv_temp=float(1.0 / temp),
        tb=tb, b_valid=B, l_valid=L)

    # constant-index inputs are single-buffered: their block never changes, so
    # double buffering would only double the resident-input VMEM footprint.
    out = pl.pallas_call(
        kernel,
        out_shape=jax.ShapeDtypeStruct((T, 8, 128), f32),
        grid=(T,),
        in_specs=[
            pl.BlockSpec((Bp, Fp), lambda i: (0, 0), pipeline_mode=pl.Buffered(1)),
            pl.BlockSpec((Bp, Lp), lambda i: (0, 0), pipeline_mode=pl.Buffered(1)),
            pl.BlockSpec((Lp, Fp), lambda i: (0, 0), pipeline_mode=pl.Buffered(1)),
            pl.BlockSpec((1, Bp), lambda i: (0, 0), pipeline_mode=pl.Buffered(1)),
        ],
        out_specs=pl.BlockSpec((1, 8, 128), lambda i: (i, 0, 0)),
        compiler_params=pltpu.CompilerParams(
            dimension_semantics=("parallel",),          # shards row tiles across TCs (v7x)
            vmem_limit_bytes=vmem_limit),
    )(x_p, lab_p, proto_p, counts)

    return jnp.sum(out[:, 0, 0]) * (1.0 / B)


# ---------------- pure-JAX reference (mirrors the PyTorch code) ----------------
def _reference_loss(output_query, labels, proto, alpha, beta, temp):
    def l2norm(v):
        n = jnp.sqrt(jnp.sum(v * v, axis=-1, keepdims=True))
        return v / jnp.maximum(n, NORM_EPS)

    X = l2norm(output_query)
    P = l2norm(proto)
    B = labels.shape[0]
    L = proto.shape[0]

    mask_diag = jnp.ones((B * (B + L),), jnp.float32)
    mask_diag = mask_diag.at[0::B + L + 1].set(0.0).reshape(B, B + L)

    sim_qq = X @ X.T
    sim_qp = X @ P.T
    mask_and = jnp.einsum('ac,bc->abc', labels, labels)
    or_build = labels[:, None, :] + labels[None, :, :]
    or_build = jnp.where(or_build == 2, 1.0, or_build)
    mask_or = or_build.sum(axis=2)
    mask_and = mask_and * (1.0 / mask_or[:, :, None]) * alpha
    normalize = mask_and.sum(axis=1) + (-alpha / labels.sum(axis=1, keepdims=True) + 1.0) * labels
    w_ff = (mask_and / (normalize[:, None, :] + EPS)).sum(axis=2)
    w_fp = labels / (normalize + EPS)
    w = jnp.concatenate([w_ff, w_fp], axis=1) * mask_diag
    final = jnp.concatenate([sim_qq, sim_qp], axis=1)
    nm = jnp.ones((B + L,), jnp.float32) * beta
    nm = nm.at[-L:].set(1.0)
    mt = final / temp
    logits = mt - jnp.max(mt, axis=1, keepdims=True)
    log_prob = logits - jnp.log(
        (jnp.exp(logits) * (mask_diag * nm[None, :])).sum(axis=1, keepdims=True))
    loss = -(log_prob * w).sum(axis=1) / labels.sum(axis=1)
    return loss.mean()


if __name__ == "__main__":
    B, L, F = 8, 8, 32
    alpha, beta, temp = 2.0, 0.5, 0.07

    key = jax.random.PRNGKey(0)
    k1, k2, k3 = jax.random.split(key, 3)
    output_query = jax.random.normal(k1, (B, F), dtype=jnp.float32)
    prototype = jax.random.normal(k2, (L, F), dtype=jnp.float32)
    # binary multi-hot labels, guaranteed >=1 positive per row
    base = (jax.random.uniform(k3, (B, L)) < 0.4).astype(jnp.float32)
    ensure = jax.nn.one_hot(jnp.arange(B) % L, L, dtype=jnp.float32)
    labels_query = jnp.maximum(base, ensure)

    loss_ref = jax.block_until_ready(
        _reference_loss(output_query, labels_query, prototype, alpha, beta, temp))

    # Fidelity check: f32 MXU path matches the (f32) PyTorch semantics closely
    # (only approx-reciprocal error remains).
    loss_f32 = jax.block_until_ready(
        loss_contrastive_msc(output_query, labels_query, prototype,
                             alpha=alpha, beta=beta, temp=temp,
                             mxu_dtype=jnp.float32))
    assert jnp.isfinite(loss_f32)
    assert jnp.allclose(loss_f32, loss_ref, rtol=1e-2, atol=1e-4), (loss_f32, loss_ref)

    # Fast path (default): bf16 MXU operands, f32 accumulation / element-wise.
    # Loose ballpark check only (bf16 operand rounding / temp=0.07 amplification).
    loss_bf16 = jax.block_until_ready(
        loss_contrastive_msc(output_query, labels_query, prototype,
                             alpha=alpha, beta=beta, temp=temp))
    assert jnp.isfinite(loss_bf16)
    assert jnp.allclose(loss_bf16, loss_ref, rtol=0.25, atol=0.05), (loss_bf16, loss_ref)

    # NOTE: benchmark at production B/L/F (B in the hundreds+, F>=128); at this
    # test shape the kernel is pure launch overhead.
    print("KERNEL_OK")
</pallas_src>

<mosaic_0001>
module attributes {stable_mosaic.version = 11 : i64} {
  func.func @_loss_contrastive_kernel(%arg0: i32, %arg1: memref<8x128xf32, #tpu.memory_space<vmem>>, %arg2: memref<8x128xf32, #tpu.memory_space<vmem>>, %arg3: memref<128x128xf32, #tpu.memory_space<vmem>>, %arg4: memref<1x8xf32, #tpu.memory_space<vmem>>, %arg5: memref<1x8x128xf32, #tpu.memory_space<vmem>>) attributes {dimension_semantics = [#tpu.dimension_semantics<parallel>], iteration_bounds = array<i64: 1>, scalar_prefetch = 0 : i64, scratch_operands = 0 : i64, tpu.core_type = #tpu.core_type<tc>, window_params = [{pipeline_mode = #tpu.pipeline_mode<synchronous>, transform_indices = @transform_0, window_bounds = array<i64: 8, 128>}, {pipeline_mode = #tpu.pipeline_mode<synchronous>, transform_indices = @transform_1, window_bounds = array<i64: 8, 128>}, {pipeline_mode = #tpu.pipeline_mode<synchronous>, transform_indices = @transform_2, window_bounds = array<i64: 128, 128>}, {pipeline_mode = #tpu.pipeline_mode<synchronous>, transform_indices = @transform_3, window_bounds = array<i64: 1, 8>}, {transform_indices = @transform_4, window_bounds = array<i64: 1, 8, 128>}]} {
    %c8_i32 = arith.constant 8 : i32
    %0 = arith.muli %arg0, %c8_i32 : i32
    %1 = tpu.assume_multiple %0, 8 : i32
    %c0 = arith.constant 0 : index
    %c0_0 = arith.constant 0 : index
    %2 = vector.load %arg1[%c0, %c0_0] : memref<8x128xf32, #tpu.memory_space<vmem>>, vector<8x128xf32>
    %c0_1 = arith.constant 0 : index
    %c0_2 = arith.constant 0 : index
    %3 = vector.load %arg2[%c0_1, %c0_2] : memref<8x128xf32, #tpu.memory_space<vmem>>, vector<8x128xf32>
    %c0_3 = arith.constant 0 : index
    %c0_4 = arith.constant 0 : index
    %4 = vector.load %arg3[%c0_3, %c0_4] : memref<128x128xf32, #tpu.memory_space<vmem>>, vector<128x128xf32>
    %5 = arith.index_cast %1 : i32 to index
    %c0_5 = arith.constant 0 : index
    %6 = vector.load %arg1[%5, %c0_5] : memref<8x128xf32, #tpu.memory_space<vmem>>, vector<8x128xf32>
    %7 = arith.index_cast %1 : i32 to index
    %c0_6 = arith.constant 0 : index
    %8 = vector.load %arg2[%7, %c0_6] : memref<8x128xf32, #tpu.memory_space<vmem>>, vector<8x128xf32>
    %cst = arith.constant dense<0.000000e+00> : vector<8x8xf32>
    %9 = tpu.matmul %6, %2, %cst {dimension_numbers = #tpu.dot_dimension_numbers<[1], [1], [0], [0], [0, 0, 1, 0], [], []>} : vector<8x128xf32>, vector<8x128xf32>, vector<8x8xf32> -> vector<8x8xf32>
    %cst_7 = arith.constant dense<0.000000e+00> : vector<8x128xf32>
    %10 = tpu.matmul %6, %4, %cst_7 {dimension_numbers = #tpu.dot_dimension_numbers<[1], [1], [0], [0], [0, 0, 1, 0], [], []>} : vector<8x128xf32>, vector<128x128xf32>, vector<8x128xf32> -> vector<8x128xf32>
    %cst_8 = arith.constant dense<0.000000e+00> : vector<8xf32>
    %11 = vector.multi_reduction <add>, %8, %cst_8 [1] : vector<8x128xf32> to vector<8xf32>
    %12 = vector.shape_cast %11 : vector<8xf32> to vector<8x1xf32>
    %cst_9 = arith.constant 1.000000e+00 : f32
    %13 = vector.broadcast %cst_9 : f32 to vector<8x1xf32>
    %14 = arith.maximumf %12, %13 : vector<8x1xf32>
    %15 = tpu.reciprocal %14 {approx = true} : vector<8x1xf32> -> vector<8x1xf32>
    %cst_10 = arith.constant dense<0.000000e+00> : vector<8x8xf32>
    %16 = tpu.matmul %8, %3, %cst_10 {dimension_numbers = #tpu.dot_dimension_numbers<[1], [1], [0], [0], [0, 0, 1, 0], [], []>} : vector<8x128xf32>, vector<8x128xf32>, vector<8x8xf32> -> vector<8x8xf32>
    %c0_11 = arith.constant 0 : index
    %c0_12 = arith.constant 0 : index
    %17 = vector.load %arg4[%c0_11, %c0_12] : memref<1x8xf32, #tpu.memory_space<vmem>>, vector<1x8xf32>
    %18 = vector.broadcast %14 : vector<8x1xf32> to vector<8x8xf32>
    %19 = vector.broadcast %17 : vector<1x8xf32> to vector<8x8xf32>
    %20 = arith.addf %18, %19 : vector<8x8xf32>
    %21 = arith.subf %20, %16 : vector<8x8xf32>
    %cst_13 = arith.constant 1.000000e+00 : f32
    %22 = vector.broadcast %cst_13 : f32 to vector<8x8xf32>
    %23 = arith.maximumf %21, %22 : vector<8x8xf32>
    %24 = tpu.reciprocal %23 {approx = true} : vector<8x8xf32> -> vector<8x8xf32>
    %cst_14 = arith.constant dense<0.000000e+00> : vector<8x128xf32>
    %25 = tpu.matmul %24, %3, %cst_14 {dimension_numbers = #tpu.dot_dimension_numbers<[1], [0], [0], [1], [0, 0, 1, 1], [], []>} : vector<8x8xf32>, vector<8x128xf32>, vector<8x128xf32> -> vector<8x128xf32>
    %cst_15 = arith.constant 2.000000e+00 : f32
    %26 = vector.broadcast %cst_15 : f32 to vector<8x128xf32>
    %27 = arith.mulf %26, %25 : vector<8x128xf32>
    %cst_16 = arith.constant 1.000000e+00 : f32
    %28 = vector.broadcast %cst_16 : f32 to vector<8x128xf32>
    %29 = arith.addf %27, %28 : vector<8x128xf32>
    %cst_17 = arith.constant 2.000000e+00 : f32
    %30 = vector.broadcast %cst_17 : f32 to vector<8x1xf32>
    %31 = arith.mulf %30, %15 : vector<8x1xf32>
    %32 = vector.broadcast %31 : vector<8x1xf32> to vector<8x128xf32>
    %33 = arith.subf %29, %32 : vector<8x128xf32>
    %34 = arith.mulf %8, %33 : vector<8x128xf32>
    %cst_18 = arith.constant 9.99999993E-9 : f32
    %35 = vector.broadcast %cst_18 : f32 to vector<8x128xf32>
    %36 = arith.addf %34, %35 : vector<8x128xf32>
    %37 = tpu.reciprocal %36 {approx = true} : vector<8x128xf32> -> vector<8x128xf32>
    %38 = arith.mulf %8, %37 : vector<8x128xf32>
    %cst_19 = arith.constant dense<0.000000e+00> : vector<8x8xf32>
    %39 = tpu.matmul %38, %3, %cst_19 {dimension_numbers = #tpu.dot_dimension_numbers<[1], [1], [0], [0], [0, 0, 1, 0], [], []>} : vector<8x128xf32>, vector<8x128xf32>, vector<8x8xf32> -> vector<8x8xf32>
    %40 = tpu.iota {dimensions = array<i32: 0>} : vector<8x8xi32>
    %41 = vector.broadcast %1 : i32 to vector<8x8xi32>
    %42 = arith.addi %41, %40 : vector<8x8xi32>
    %43 = tpu.iota {dimensions = array<i32: 1>} : vector<8x8xi32>
    %44 = arith.cmpi ne, %42, %43 : vector<8x8xi32>
    %c8_i32_20 = arith.constant 8 : i32
    %45 = vector.broadcast %c8_i32_20 : i32 to vector<8x8xi32>
    %46 = arith.cmpi slt, %43, %45 : vector<8x8xi32>
    %47 = arith.andi %44, %46 : vector<8x8xi1>
    %48 = tpu.iota {dimensions = array<i32: 1>} : vector<8x128xi32>
    %c8_i32_21 = arith.constant 8 : i32
    %49 = vector.broadcast %c8_i32_21 : i32 to vector<8x128xi32>
    %50 = arith.cmpi slt, %48, %49 : vector<8x128xi32>
    %cst_22 = arith.constant 2.000000e+00 : f32
    %51 = vector.broadcast %cst_22 : f32 to vector<8x8xf32>
    %52 = arith.mulf %51, %39 : vector<8x8xf32>
    %53 = arith.mulf %52, %24 : vector<8x8xf32>
    %cst_23 = arith.constant 0.000000e+00 : f32
    %54 = vector.broadcast %cst_23 : f32 to vector<8x8xf32>
    %55 = arith.select %47, %53, %54 : vector<8x8xi1>, vector<8x8xf32>
    %cst_24 = arith.constant 14.2857141 : f32
    %56 = vector.broadcast %cst_24 : f32 to vector<8x8xf32>
    %57 = arith.mulf %9, %56 : vector<8x8xf32>
    %cst_25 = arith.constant 14.2857141 : f32
    %58 = vector.broadcast %cst_25 : f32 to vector<8x128xf32>
    %59 = arith.mulf %10, %58 : vector<8x128xf32>
    %cst_26 = arith.constant dense<0xFF800000> : vector<8xf32>
    %60 = vector.multi_reduction <maximumf>, %57, %cst_26 [1] : vector<8x8xf32> to vector<8xf32>
    %61 = vector.shape_cast %60 : vector<8xf32> to vector<8x1xf32>
    %cst_27 = arith.constant dense<0xFF800000> : vector<8xf32>
    %62 = vector.multi_reduction <maximumf>, %59, %cst_27 [1] : vector<8x128xf32> to vector<8xf32>
    %63 = vector.shape_cast %62 : vector<8xf32> to vector<8x1xf32>
    %64 = arith.maximumf %61, %63 : vector<8x1xf32>
    %65 = vector.broadcast %64 : vector<8x1xf32> to vector<8x8xf32>
    %66 = arith.subf %57, %65 : vector<8x8xf32>
    %67 = vector.broadcast %64 : vector<8x1xf32> to vector<8x128xf32>
    %68 = arith.subf %59, %67 : vector<8x128xf32>
    %cst_28 = arith.constant dense<0.000000e+00> : vector<8xf32>
    %69 = vector.multi_reduction <add>, %55, %cst_28 [1] : vector<8x8xf32> to vector<8xf32>
    %70 = vector.shape_cast %69 : vector<8xf32> to vector<8x1xf32>
    %cst_29 = arith.constant dense<0.000000e+00> : vector<8xf32>
    %71 = vector.multi_reduction <add>, %38, %cst_29 [1] : vector<8x128xf32> to vector<8xf32>
    %72 = vector.shape_cast %71 : vector<8xf32> to vector<8x1xf32>
    %73 = arith.addf %70, %72 : vector<8x1xf32>
    %74 = arith.mulf %66, %55 : vector<8x8xf32>
    %cst_30 = arith.constant dense<0.000000e+00> : vector<8xf32>
    %75 = vector.multi_reduction <add>, %74, %cst_30 [1] : vector<8x8xf32> to vector<8xf32>
    %76 = vector.shape_cast %75 : vector<8xf32> to vector<8x1xf32>
    %77 = arith.mulf %68, %38 : vector<8x128xf32>
    %cst_31 = arith.constant dense<0.000000e+00> : vector<8xf32>
    %78 = vector.multi_reduction <add>, %77, %cst_31 [1] : vector<8x128xf32> to vector<8xf32>
    %79 = vector.shape_cast %78 : vector<8xf32> to vector<8x1xf32>
    %80 = arith.addf %76, %79 : vector<8x1xf32>
    %81 = math.exp %66 : vector<8x8xf32>
    %cst_32 = arith.constant 0.000000e+00 : f32
    %82 = vector.broadcast %cst_32 : f32 to vector<8x8xf32>
    %83 = arith.select %47, %81, %82 : vector<8x8xi1>, vector<8x8xf32>
    %cst_33 = arith.constant dense<0.000000e+00> : vector<8xf32>
    %84 = vector.multi_reduction <add>, %83, %cst_33 [1] : vector<8x8xf32> to vector<8xf32>
    %85 = vector.shape_cast %84 : vector<8xf32> to vector<8x1xf32>
    %cst_34 = arith.constant 5.000000e-01 : f32
    %86 = vector.broadcast %cst_34 : f32 to vector<8x1xf32>
    %87 = arith.mulf %86, %85 : vector<8x1xf32>
    %88 = math.exp %68 : vector<8x128xf32>
    %cst_35 = arith.constant 0.000000e+00 : f32
    %89 = vector.broadcast %cst_35 : f32 to vector<8x128xf32>
    %90 = arith.select %50, %88, %89 : vector<8x128xi1>, vector<8x128xf32>
    %cst_36 = arith.constant dense<0.000000e+00> : vector<8xf32>
    %91 = vector.multi_reduction <add>, %90, %cst_36 [1] : vector<8x128xf32> to vector<8xf32>
    %92 = vector.shape_cast %91 : vector<8xf32> to vector<8x1xf32>
    %93 = arith.addf %87, %92 : vector<8x1xf32>
    %94 = math.log %93 : vector<8x1xf32>
    %95 = arith.mulf %94, %73 : vector<8x1xf32>
    %96 = arith.subf %95, %80 : vector<8x1xf32>
    %97 = arith.mulf %96, %15 : vector<8x1xf32>
    %cst_37 = arith.constant dense<0.000000e+00> : vector<1xf32>
    %98 = vector.multi_reduction <add>, %97, %cst_37 [0] : vector<8x1xf32> to vector<1xf32>
    %99 = vector.shape_cast %98 : vector<1xf32> to vector<1x1xf32>
    %100 = vector.shape_cast %99 : vector<1x1xf32> to vector<1x1x1xf32>
    %101 = vector.broadcast %100 : vector<1x1x1xf32> to vector<1x8x128xf32>
    %c0_38 = arith.constant 0 : index
    %c0_39 = arith.constant 0 : index
    %c0_40 = arith.constant 0 : index
    %102 = vector.load %arg5[%c0_38, %c0_39, %c0_40] : memref<1x8x128xf32, #tpu.memory_space<vmem>>, vector<1x8x128xf32>
    tpu.vector_store %arg5[%c0_38, %c0_39, %c0_40], %101 {strides = array<i32>} : memref<1x8x128xf32, #tpu.memory_space<vmem>>, vector<1x8x128xf32>,
    return
  }
  func.func @transform_0(%arg0: i32) -> (i32, i32) {
    %c0_i32 = arith.constant 0 : i32
    %c0_i32_0 = arith.constant 0 : i32
    %c0_i32_1 = arith.constant 0 : i32
    return %c0_i32, %c0_i32_0 : i32, i32
  }
  func.func @transform_1(%arg0: i32) -> (i32, i32) {
    %c0_i32 = arith.constant 0 : i32
    %c0_i32_0 = arith.constant 0 : i32
    %c0_i32_1 = arith.constant 0 : i32
    return %c0_i32, %c0_i32_0 : i32, i32
  }
  func.func @transform_2(%arg0: i32) -> (i32, i32) {
    %c0_i32 = arith.constant 0 : i32
    %c0_i32_0 = arith.constant 0 : i32
    %c0_i32_1 = arith.constant 0 : i32
    return %c0_i32, %c0_i32_0 : i32, i32
  }
  func.func @transform_3(%arg0: i32) -> (i32, i32) {
    %c0_i32 = arith.constant 0 : i32
    %c0_i32_0 = arith.constant 0 : i32
    %c0_i32_1 = arith.constant 0 : i32
    return %c0_i32, %c0_i32_0 : i32, i32
  }
  func.func @transform_4(%arg0: i32) -> (i32, i32, i32) {
    %c0_i32 = arith.constant 0 : i32
    %c0_i32_0 = arith.constant 0 : i32
    %c0_i32_1 = arith.constant 0 : i32
    return %arg0, %c0_i32, %c0_i32_0 : i32, i32, i32
  }
}

</mosaic_0001>

<llo_original>
// kernel: tpu_custom_call.1
$region0: #{tpu_custom_call.1}
  #allocation0 [shape = 'u32[]', space=smem, size = 0x4, offset = 0x4, fixed_abs, tag = 'smem constant byte address 0x4 - core index']
  #allocation1 [shape = 'u32[72,128]{1,0:T(1,128)}', space=vmem, size = 0x9000, scoped, tag = 'internal scratch']
  %s0 = inlined_call_operand.hbm [shape: f32[8,128], index: 0, kind: input, shape index: {}]
  %s1 = inlined_call_operand.hbm [shape: f32[8,128], index: 1, kind: input, shape index: {}]
  %s2 = inlined_call_operand.hbm [shape: f32[128,128], index: 2, kind: input, shape index: {}]
  %s3 = inlined_call_operand.vmem [shape: f32[1,8], index: 3, kind: input, shape index: {}]
  %s4 = inlined_call_operand.hbm [shape: f32[1,8,128], index: 4, kind: output, shape index: {}]
  %s5 = sld [smem:[#allocation0]]
  $region38: #{tpu_custom_call.1} parent=0
    _
  %s7 = ssub.s32 1, %s5
  %s8 = scalar_select 0, %s7, %s5
  $region1: #{tpu_custom_call.1} parent=0
    #allocation2 [shape = 'u8[4096]{0}', space=vmem, size = 0x1000, scoped, tag = 'input window, operand 0, single buffered']
    #allocation3 [shape = 's32[1]{0}', space=sflag, size = 0x4, scoped, tag = 'scoped memory for tpu_custom_call.1']
    #allocation4 [shape = 's32[1]{0}', space=sflag, size = 0x4, scoped, tag = 'scoped memory for tpu_custom_call.1']
    #allocation5 [shape = 'u8[4096]{0}', space=vmem, size = 0x1000, scoped, tag = 'input window, operand 1, single buffered']
    #allocation6 [shape = 's32[1]{0}', space=sflag, size = 0x4, scoped, tag = 'scoped memory for tpu_custom_call.1']
    #allocation7 [shape = 'u8[65536]{0}', space=vmem, size = 0x10000, scoped, tag = 'input window, operand 2, single buffered']
    #allocation8 [shape = 'u8[4096]{0}', space=vmem, size = 0x1000, scoped, tag = 'output window, operand 0, single buffered']
    %9 = vsyncpa [#allocation3], 0
    %10 = vsyncpa [#allocation6], 0
    %11 = vsyncpa [#allocation4], 0
    // Predicated region
    $region2: #{tpu_custom_call.1} parent=1 // pred_check
      _
    $region3: #{tpu_custom_call.1} parent=1 // pred_check_branch
      %13 = sbr.rel (0) target = $region5
    $region4: #{tpu_custom_call.1} parent=1 // pred_region
      %15 = vsyncadd [#allocation3], 0
      %s17 = sshll.u32 %s0, 4
      %s18 = int_to_ptr.hbm [resolvable:$true] %s17
      %s19 = sshll.u32 [#allocation2], 4
      %s20 = int_to_ptr.vmem [resolvable:$true] %s19
      %22 = dma.hbm_to_vmem [thread:$0]  %s18, 128, %s20, [#allocation3]
    $region5: #{tpu_custom_call.1} parent=1 // pred_fallthru
      _
    // Predicated region
    $region6: #{tpu_custom_call.1} parent=1 // pred_check
      _
    $region7: #{tpu_custom_call.1} parent=1 // pred_check_branch
      %24 = sbr.rel (0) target = $region9
    $region8: #{tpu_custom_call.1} parent=1 // pred_region
      %26 = vsyncadd [#allocation6], 0
      %s28 = sshll.u32 %s1, 4
      %s29 = int_to_ptr.hbm [resolvable:$true] %s28
      %s30 = sshll.u32 [#allocation5], 4
      %s31 = int_to_ptr.vmem [resolvable:$true] %s30
      %33 = dma.hbm_to_vmem [thread:$0]  %s29, 128, %s31, [#allocation6]
    $region9: #{tpu_custom_call.1} parent=1 // pred_fallthru
      _
    // Predicated region
    $region10: #{tpu_custom_call.1} parent=1 // pred_check
      _
    $region11: #{tpu_custom_call.1} parent=1 // pred_check_branch
      %35 = sbr.rel (0) target = $region13
    $region12: #{tpu_custom_call.1} parent=1 // pred_region
      %37 = vsyncadd [#allocation6], 0
      %s38 = sshll.u32 %s2, 4
      %s39 = int_to_ptr.hbm [resolvable:$true] %s38
      %s40 = sshll.u32 [#allocation7], 4
      %s41 = int_to_ptr.vmem [resolvable:$true] %s40
      %46 = dma.hbm_to_vmem [thread:$0]  %s39, 2048, %s41, [#allocation6], 128, 128, 8
    $region13: #{tpu_custom_call.1} parent=1 // pred_fallthru
      _
    // Predicated region
    $region14: #{tpu_custom_call.1} parent=1 // pred_check
      _
    $region15: #{tpu_custom_call.1} parent=1 // pred_check_branch
      %48 = sbr.rel (0) target = $region17
    $region16: #{tpu_custom_call.1} parent=1 // pred_region
      _
    $region17: #{tpu_custom_call.1} parent=1 // pred_fallthru
      _
    // Predicated region
    $region18: #{tpu_custom_call.1} parent=1 // pred_check
      _
    $region19: #{tpu_custom_call.1} parent=1 // pred_check_branch
      %50 = sbr.rel (0) target = $region21
    $region20: #{tpu_custom_call.1} parent=1 // pred_region
      %52 = dma.done [#allocation3], 128
    $region21: #{tpu_custom_call.1} parent=1 // pred_fallthru
      _
    // Predicated region
    $region22: #{tpu_custom_call.1} parent=1 // pred_check
      _
    $region23: #{tpu_custom_call.1} parent=1 // pred_check_branch
      %54 = sbr.rel (0) target = $region25
    $region24: #{tpu_custom_call.1} parent=1 // pred_region
      %56 = dma.done [#allocation6], 128
    $region25: #{tpu_custom_call.1} parent=1 // pred_fallthru
      _
    // Predicated region
    $region26: #{tpu_custom_call.1} parent=1 // pred_check
      _
    $region27: #{tpu_custom_call.1} parent=1 // pred_check_branch
      %58 = sbr.rel (0) target = $region29
    $region28: #{tpu_custom_call.1} parent=1 // pred_region
      %60 = dma.done [#allocation6], 2048
    $region29: #{tpu_custom_call.1} parent=1 // pred_fallthru
      _
    %s61 = smul.u32 0, 8
    %v62 = vld [vmem:[#allocation2] sm:$0xff]
    %v63 = vld [vmem:[#allocation5] sm:$0xff]
    %v64 = vld [vmem:[#allocation7] sm:$0xff]
    %v65 = vld [vmem:[#allocation7 + $0x8] sm:$0xff]
    %v66 = vld [vmem:[#allocation7 + $0x10] sm:$0xff]
    %v67 = vld [vmem:[#allocation7 + $0x18] sm:$0xff]
    %v68 = vld [vmem:[#allocation7 + $0x20] sm:$0xff]
    %v69 = vld [vmem:[#allocation7 + $0x28] sm:$0xff]
    %v70 = vld [vmem:[#allocation7 + $0x30] sm:$0xff]
    %v71 = vld [vmem:[#allocation7 + $0x38] sm:$0xff]
    %v72 = vld [vmem:[#allocation7 + $0x40] sm:$0xff]
    %v73 = vld [vmem:[#allocation7 + $0x48] sm:$0xff]
    %v74 = vld [vmem:[#allocation7 + $0x50] sm:$0xff]
    %v75 = vld [vmem:[#allocation7 + $0x58] sm:$0xff]
    %v76 = vld [vmem:[#allocation7 + $0x60] sm:$0xff]
    %v77 = vld [vmem:[#allocation7 + $0x68] sm:$0xff]
    %v78 = vld [vmem:[#allocation7 + $0x70] sm:$0xff]
    %v79 = vld [vmem:[#allocation7 + $0x78] sm:$0xff]
    %s80 = scalar_lea.vmem [#allocation2], %s61
    %v81 = vld [vmem:[%s80] sm:$0xff]
    %s82 = scalar_lea.vmem [#allocation5], %s61
    %v83 = vld [vmem:[%s82] sm:$0xff]
    %84 = vmatpush.xpose.msra.mxu0 0.0
    %85 = vmatpush.xpose.msra.mxu0 0.0
    %86 = vmatpush.xpose.msra.mxu0 0.0
    %87 = vmatpush.xpose.msra.mxu0 0.0
    %88 = vmatpush.xpose.msra.mxu0 0.0
    %89 = vmatpush.xpose.msra.mxu0 0.0
    %90 = vmatpush.xpose.msra.mxu0 0.0
    %91 = vmatpush.xpose.msra.mxu0 0.0
    %92 = vmatpush.xpose.msra.mxu0 0.0
    %93 = vmatpush.xpose.msra.mxu0 0.0
    %94 = vmatpush.xpose.msra.mxu0 0.0
    %95 = vmatpush.xpose.msra.mxu0 0.0
    %96 = vmatpush.xpose.msra.mxu0 0.0
    %97 = vmatpush.xpose.msra.mxu0 0.0
    %98 = vmatpush.xpose.msra.mxu0 0.0
    %99 = vmatpush.xpose.msra.mxu0 %v62
    %100 = vmatmul.f32.gmra.mxu0 %v81
    %v101 = vpop.f32.mrf.mxu0
    %v102 = vadd.f32 0.0, %v101
    %103 = vdwg.mxu0
    %104 = vmatpush.xpose.msra.mxu0 %v79
    %105 = vmatpush.xpose.msra.mxu0 %v78
    %106 = vmatpush.xpose.msra.mxu0 %v77
    %107 = vmatpush.xpose.msra.mxu0 %v76
    %108 = vmatpush.xpose.msra.mxu0 %v75
    %109 = vmatpush.xpose.msra.mxu0 %v74
    %110 = vmatpush.xpose.msra.mxu0 %v73
    %111 = vmatpush.xpose.msra.mxu0 %v72
    %112 = vmatpush.xpose.msra.mxu0 %v71
    %113 = vmatpush.xpose.msra.mxu0 %v70
    %114 = vmatpush.xpose.msra.mxu0 %v69
    %115 = vmatpush.xpose.msra.mxu0 %v68
    %116 = vmatpush.xpose.msra.mxu0 %v67
    %117 = vmatpush.xpose.msra.mxu0 %v66
    %118 = vmatpush.xpose.msra.mxu0 %v65
    %119 = vmatpush.xpose.msra.mxu0 %v64
    %120 = vmatmul.f32.gmra.mxu0 %v81
    %v121 = vpop.f32.mrf.mxu0
    %v122 = vadd.f32 0.0, %v121
    %123 = vdwg.mxu0
    %124 = vadd.xlane.f32.xlu0 %v83
    %v125 = vpop.xlane.xlu0 %124
    %v126 = vmax.f32 %v125, 1.0
    %v127 = vrcp.pop %v126
    %128 = vmatpush.xpose.msra.mxu0 0.0
    %129 = vmatpush.xpose.msra.mxu0 0.0
    %130 = vmatpush.xpose.msra.mxu0 0.0
    %131 = vmatpush.xpose.msra.mxu0 0.0
    %132 = vmatpush.xpose.msra.mxu0 0.0
    %133 = vmatpush.xpose.msra.mxu0 0.0
    %134 = vmatpush.xpose.msra.mxu0 0.0
    %135 = vmatpush.xpose.msra.mxu0 0.0
    %136 = vmatpush.xpose.msra.mxu0 0.0
    %137 = vmatpush.xpose.msra.mxu0 0.0
    %138 = vmatpush.xpose.msra.mxu0 0.0
    %139 = vmatpush.xpose.msra.mxu0 0.0
    %140 = vmatpush.xpose.msra.mxu0 0.0
    %141 = vmatpush.xpose.msra.mxu0 0.0
    %142 = vmatpush.xpose.msra.mxu0 0.0
    %143 = vmatpush.xpose.msra.mxu0 %v63
    %144 = vmatmul.f32.gmra.mxu0 %v83
    %v145 = vpop.f32.mrf.mxu0
    %v146 = vadd.f32 0.0, %v145
    %147 = vdwg.mxu0
    %v148 = vld [vmem:[%s3] sm:$0x1]
    %v150 = vperm.slane %v148, 0
    %v152 = vadd.f32 %v126, %v150
    %v153 = vsub.f32 %v152, %v146
    %v154 = vmax.f32 %v153, 1.0
    %v155 = vrcp.pop %v154
    %vm156 = vcmask 64512
    %v158 = vsel %vm156, %v155, 0
    %160 = vmatpush.msra.mxu0 0.0
    %161 = vmatpush.msra.mxu0 0.0
    %162 = vmatpush.msra.mxu0 0.0
    %163 = vmatpush.msra.mxu0 0.0
    %164 = vmatpush.msra.mxu0 0.0
    %165 = vmatpush.msra.mxu0 0.0
    %166 = vmatpush.msra.mxu0 0.0
    %167 = vmatpush.msra.mxu0 0.0
    %168 = vmatpush.msra.mxu0 0.0
    %169 = vmatpush.msra.mxu0 0.0
    %170 = vmatpush.msra.mxu0 0.0
    %171 = vmatpush.msra.mxu0 0.0
    %172 = vmatpush.msra.mxu0 0.0
    %173 = vmatpush.msra.mxu0 0.0
    %174 = vmatpush.msra.mxu0 0.0
    %175 = vmatpush.msra.mxu0 %v63
    %176 = vmatmul.f32.gmra.mxu0 %v158
    %v177 = vpop.f32.mrf.mxu0
    %v178 = vadd.f32 0.0, %v177
    %179 = vdwg.mxu0
    %v180 = vmul.f32 %v178, 2.0
    %v181 = vadd.f32 %v180, 1.0
    %v182 = vmul.f32 %v127, 2.0
    %v183 = vsub.f32 %v181, %v182
    %v184 = vmul.f32 %v83, %v183
    %v185 = vadd.f32 %v184, 1e-08
    %v186 = vrcp.pop %v185
    %v187 = vmul.f32 %v83, %v186
    %188 = vmatpush.xpose.msra.mxu0 0.0
    %189 = vmatpush.xpose.msra.mxu0 0.0
    %190 = vmatpush.xpose.msra.mxu0 0.0
    %191 = vmatpush.xpose.msra.mxu0 0.0
    %192 = vmatpush.xpose.msra.mxu0 0.0
    %193 = vmatpush.xpose.msra.mxu0 0.0
    %194 = vmatpush.xpose.msra.mxu0 0.0
    %195 = vmatpush.xpose.msra.mxu0 0.0
    %196 = vmatpush.xpose.msra.mxu0 0.0
    %197 = vmatpush.xpose.msra.mxu0 0.0
    %198 = vmatpush.xpose.msra.mxu0 0.0
    %199 = vmatpush.xpose.msra.mxu0 0.0
    %200 = vmatpush.xpose.msra.mxu0 0.0
    %201 = vmatpush.xpose.msra.mxu0 0.0
    %202 = vmatpush.xpose.msra.mxu0 0.0
    %203 = vmatpush.xpose.msra.mxu0 %v63
    %204 = vmatmul.f32.gmra.mxu0 %v187
    %v205 = vpop.f32.mrf.mxu0
    %v206 = vadd.f32 0.0, %v205
    %207 = vdwg.mxu0
    %v208 = vlaneseq
    %v209 = vshrl.u32 %v208, 7
    %v210 = vstv %s61
    %v211 = vadd.s32 %v210, %v209
    %v212 = vlaneseq
    %v213 = vand.u32 %v212, 127
    %vm214 = vcmp.ne.s32.totalorder %v211, %v213
    %vm215 = vcmp.lt.s32.totalorder %v213, 8
    %vm216 = vmand %vm214, %vm215
    %v217 = vmul.f32 %v206, 2.0
    %v218 = vmul.f32 %v217, %v155
    %v219 = vsel %vm216, %v218, 0.0
    %v220 = vmul.f32 %v102, 14.285714
    %v221 = vmul.f32 %v122, 14.285714
    %v222 = vsel %vm156, %v220, -inf
    %223 = vmax.xlane.f32.xlu0 %v222
    %v224 = vpop.xlane.xlu0 %223
    %225 = vmax.xlane.f32.xlu0 %v221
    %v226 = vpop.xlane.xlu0 %225
    %v227 = vmax.f32 %v224, %v226
    %v228 = vsub.f32 %v220, %v227
    %v229 = vsub.f32 %v221, %v227
    %v230 = vsel %vm156, %v219, 0.0
    %231 = vadd.xlane.f32.xlu0 %v230
    %v232 = vpop.xlane.xlu0 %231
    %233 = vadd.xlane.f32.xlu0 %v187
    %v234 = vpop.xlane.xlu0 %233
    %v235 = vadd.f32 %v232, %v234
    %v236 = vmul.f32 %v228, %v219
    %v237 = vsel %vm156, %v236, 0.0
    %238 = vadd.xlane.f32.xlu0 %v237
    %v239 = vpop.xlane.xlu0 %238
    %v240 = vmul.f32 %v229, %v187
    %241 = vadd.xlane.f32.xlu0 %v240
    %v242 = vpop.xlane.xlu0 %241
    %v243 = vadd.f32 %v239, %v242
    %v244 = vmul.f32 %v228, 1.442695
    %v245 = vpow.pop %v244
    %v246 = vsel %vm216, %v245, 0.0
    %v247 = vsel %vm156, %v246, 0.0
    %248 = vadd.xlane.f32.xlu0 %v247
    %v249 = vpop.xlane.xlu0 %248
    %v250 = vmul.f32 %v249, 0.5
    %v251 = vmul.f32 %v229, 1.442695
    %v252 = vpow.pop %v251
    %v253 = vsel %vm215, %v252, 0.0
    %254 = vadd.xlane.f32.xlu0 %v253
    %v255 = vpop.xlane.xlu0 %254
    %v256 = vadd.f32 %v250, %v255
    %v257 = vlog2.pop %v256
    %v258 = vmul.f32 %v257, 0.6931472
    %v259 = vmul.f32 %v258, %v235
    %v260 = vsub.f32 %v259, %v243
    %v261 = vmul.f32 %v260, %v127
    %v262 = vrot.slane %v261, 4
    %v263 = vadd.f32 %v261, %v262
    %v264 = vrot.slane %v263, 2
    %v265 = vadd.f32 %v263, %v264
    %v266 = vrot.slane %v265, 1
    %v267 = vadd.f32 %v265, %v266
    %268 = vst [vmem:[#allocation8] sm:$0xff] %v267
    // Predicated region
    $region30: #{tpu_custom_call.1} parent=1 // pred_check
      _
    $region31: #{tpu_custom_call.1} parent=1 // pred_check_branch
      %270 = sbr.rel (0) target = $region33
    $region32: #{tpu_custom_call.1} parent=1 // pred_region
      %272 = vsyncadd [#allocation4], 0
      %s274 = sshll.u32 [#allocation8], 4
      %s275 = int_to_ptr.vmem [resolvable:$true] %s274
      %s276 = sshll.u32 %s4, 4
      %s277 = int_to_ptr.hbm [resolvable:$true] %s276
      %279 = dma.vmem_to_hbm [thread:$0]  %s275, 128, %s277, [#allocation4]
    $region33: #{tpu_custom_call.1} parent=1 // pred_fallthru
      _
    // Predicated region
    $region34: #{tpu_custom_call.1} parent=1 // pred_check
      _
    $region35: #{tpu_custom_call.1} parent=1 // pred_check_branch
      %281 = sbr.rel (0) target = $region37
    $region36: #{tpu_custom_call.1} parent=1 // pred_region
      %283 = dma.done [#allocation4], 128
    $region37: #{tpu_custom_call.1} parent=1 // pred_fallthru
      _
    %284 = vsyncpa [#allocation3], 1
    %285 = vsyncpa [#allocation6], 1
    %286 = vsyncpa [#allocation4], 1

</llo_original>
